<compile_context>
chip_gen: v5e
topology: v5e:2x2
jax: 0.10.0
libtpu: 0.0.40
codegen_flags: <defaults>
</compile_context>

<pallas_src>
import functools

import jax
import jax.numpy as jnp
from jax import lax
from jax.experimental import pallas as pl
from jax.experimental.pallas import tpu as pltpu

_MASK_VALUE = -jnp.finfo(jnp.float32).max  # matches -torch.finfo(sim.dtype).max


def _masked_sim(q, k, mask_row, causal, q_i, kv_i, tq, tkv, scale):
    """Scaled Q.K^T for one (tq, tkv) block with optional key-mask / causal mask."""
    qs = q * scale                                              # (tq, D) VPU, cheap
    sim = lax.dot_general(
        qs, k, dimension_numbers=(((1,), (1,)), ((), ())),
        preferred_element_type=jnp.float32)                     # (tq, tkv)
    if mask_row is not None:
        sim = jnp.where(mask_row != 0, sim, _MASK_VALUE)        # (1, tkv) broadcast
    if causal:
        row = q_i * tq + lax.broadcasted_iota(jnp.int32, sim.shape, 0)
        col = kv_i * tkv + lax.broadcasted_iota(jnp.int32, sim.shape, 1)
        sim = jnp.where(col > row, _MASK_VALUE, sim)
    return sim


def _attend_kernel_single(*refs, scale, causal, has_mask, tq, tkv):
    """One kv block per q block: plain stable softmax, no scratch / no init-finalize."""
    if has_mask:
        q_ref, k_ref, v_ref, mask_ref, o_ref = refs
        mask_row = mask_ref[0]
    else:
        q_ref, k_ref, v_ref, o_ref = refs
        mask_row = None

    q_i = pl.program_id(1)
    sim = _masked_sim(q_ref[0], k_ref[0], mask_row, causal, q_i, 0, tq, tkv, scale)

    m = jnp.max(sim, axis=-1, keepdims=True)
    p = jnp.exp(sim - m)                                        # (tq, tkv)
    l = jnp.sum(p, axis=-1, keepdims=True)
    acc = jnp.dot(p.astype(v_ref.dtype), v_ref[0], preferred_element_type=jnp.float32)
    o_ref[0] = (acc * pl.reciprocal(l, approx=False)).astype(o_ref.dtype)


def _attend_kernel_flash(*refs, scale, causal, has_mask, tq, tkv):
    """Multiple kv blocks: online softmax with VMEM scratch accumulators."""
    if has_mask:
        q_ref, k_ref, v_ref, mask_ref, o_ref, m_sc, l_sc, acc_sc = refs
    else:
        q_ref, k_ref, v_ref, o_ref, m_sc, l_sc, acc_sc = refs
        mask_ref = None

    q_i = pl.program_id(1)
    kv_i = pl.program_id(2)

    @pl.when(kv_i == 0)
    def _init():
        m_sc[...] = jnp.full_like(m_sc, -jnp.inf)
        l_sc[...] = jnp.zeros_like(l_sc)
        acc_sc[...] = jnp.zeros_like(acc_sc)

    def _compute_block():
        mask_row = mask_ref[0] if has_mask else None
        sim = _masked_sim(q_ref[0], k_ref[0], mask_row, causal, q_i, kv_i, tq, tkv, scale)

        # Online softmax update.
        m_prev = m_sc[...]                                      # (tq, 1)
        m_new = jnp.maximum(m_prev, jnp.max(sim, axis=-1, keepdims=True))
        alpha = jnp.exp(m_prev - m_new)
        p = jnp.exp(sim - m_new)                                # (tq, tkv)
        l_sc[...] = alpha * l_sc[...] + jnp.sum(p, axis=-1, keepdims=True)
        acc_sc[...] = alpha * acc_sc[...] + jnp.dot(
            p.astype(v_ref.dtype), v_ref[0], preferred_element_type=jnp.float32)
        m_sc[...] = m_new

    if causal:
        # Skip kv blocks lying entirely above the diagonal for this q block
        # (saves ~2x MXU/VPU work for causal attention).
        pl.when(kv_i * tkv <= q_i * tq + (tq - 1))(_compute_block)
    else:
        _compute_block()

    @pl.when(kv_i == pl.num_programs(2) - 1)
    def _finalize():
        # Deferred normalization: one O(tq*D) multiply.
        inv_l = pl.reciprocal(l_sc[...], approx=False)
        o_ref[0] = (acc_sc[...] * inv_l).astype(o_ref.dtype)


def _pick_tile(dim, preferred):
    """Largest candidate tile (multiple of 128) that divides `dim`, else full dim."""
    for t in (preferred, 512, 256, 128):
        if 0 < t <= dim and dim % t == 0 and t % 128 == 0:
            return t
    return dim  # full extent is always a legal block shape


def attend(q, k, v, mask=None, *, causal=False, tq=256, tkv=512):
    """Pallas equivalent of Attend.forward (eval mode, dropout=0, use_flash=False).

    q: (B, H, N, D); k, v: (B, H, J, D) or shared (B, J, D); mask: optional (B, J) bool.
    tq/tkv are preferred tile sizes (v5e: tq=128; v6e: tq=256-512, tkv=1024; v7x: tq=128-256).
    """
    B, H, N, D = q.shape
    kv_shared = (k.ndim == 3)          # 'b j d' case
    J = k.shape[-2]
    scale = float(D) ** -0.5
    BH = B * H

    tq_ = _pick_tile(N, tq)
    tkv_ = _pick_tile(J, tkv)
    n_q_blocks = N // tq_
    n_kv_blocks = J // tkv_
    single_kv = (n_kv_blocks == 1)

    qf = q.reshape(BH, N, D)
    if kv_shared:
        # Keep shared K/V as (B, J, D) in HBM; no H-fold broadcast copies.
        kf, vf = k, v
        kv_b = lambda bh: bh // H
    else:
        kf = k.reshape(BH, J, D)
        vf = v.reshape(BH, J, D)
        kv_b = lambda bh: bh

    has_mask = mask is not None
    if has_mask:
        # Keep the mask at (B, 1, J); per-head blocks are identical, index b = bh // H.
        mf = mask.reshape(B, 1, J).astype(jnp.int32)

    if single_kv:
        grid = (BH, n_q_blocks)
        in_specs = [
            pl.BlockSpec((1, tq_, D), lambda bh, qi: (bh, qi, 0)),
            pl.BlockSpec((1, tkv_, D), lambda bh, qi: (kv_b(bh), 0, 0)),
            pl.BlockSpec((1, tkv_, D), lambda bh, qi: (kv_b(bh), 0, 0)),
        ]
        inputs = [qf, kf, vf]
        if has_mask:
            in_specs.append(pl.BlockSpec((1, 1, tkv_), lambda bh, qi: (bh // H, 0, 0)))
            inputs.append(mf)
        out_specs = pl.BlockSpec((1, tq_, D), lambda bh, qi: (bh, qi, 0))
        scratch_shapes = []
        semantics = ("parallel", "parallel")
        kernel = functools.partial(
            _attend_kernel_single, scale=scale, causal=causal, has_mask=has_mask,
            tq=tq_, tkv=tkv_)
    else:
        grid = (BH, n_q_blocks, n_kv_blocks)
        in_specs = [
            pl.BlockSpec((1, tq_, D), lambda bh, qi, ki: (bh, qi, 0)),
            pl.BlockSpec((1, tkv_, D), lambda bh, qi, ki: (kv_b(bh), ki, 0)),
            pl.BlockSpec((1, tkv_, D), lambda bh, qi, ki: (kv_b(bh), ki, 0)),
        ]
        inputs = [qf, kf, vf]
        if has_mask:
            in_specs.append(
                pl.BlockSpec((1, 1, tkv_), lambda bh, qi, ki: (bh // H, 0, ki)))
            inputs.append(mf)
        out_specs = pl.BlockSpec((1, tq_, D), lambda bh, qi, ki: (bh, qi, 0))
        scratch_shapes = [
            pltpu.VMEM((tq_, 1), jnp.float32),   # running max m
            pltpu.VMEM((tq_, 1), jnp.float32),   # running denominator l
            pltpu.VMEM((tq_, D), jnp.float32),   # running numerator acc
        ]
        semantics = ("parallel", "parallel", "arbitrary")
        kernel = functools.partial(
            _attend_kernel_flash, scale=scale, causal=causal, has_mask=has_mask,
            tq=tq_, tkv=tkv_)

    out = pl.pallas_call(
        kernel,
        out_shape=jax.ShapeDtypeStruct((BH, N, D), q.dtype),
        grid_spec=pltpu.PrefetchScalarGridSpec(
            num_scalar_prefetch=0,
            grid=grid,
            in_specs=in_specs,
            out_specs=out_specs,
            scratch_shapes=scratch_shapes,
        ),
        compiler_params=pltpu.CompilerParams(dimension_semantics=semantics),
    )(*inputs)

    return out.reshape(B, H, N, D)


def _attend_ref(q, k, v, mask=None, *, causal=False):
    """Pure-JAX reference mirroring the PyTorch forward."""
    B, H, N, D = q.shape
    if k.ndim == 3:
        k = jnp.broadcast_to(k[:, None], (B, H) + k.shape[1:])
    if v.ndim == 3:
        v = jnp.broadcast_to(v[:, None], (B, H) + v.shape[1:])
    scale = float(D) ** -0.5
    sim = jnp.einsum("bhid,bhjd->bhij", q, k) * scale
    mask_value = -jnp.finfo(sim.dtype).max
    if mask is not None:
        sim = jnp.where(mask[:, None, None, :], sim, mask_value)
    if causal:
        J = sim.shape[-1]
        cm = jnp.triu(jnp.ones((N, J), dtype=bool), 1)
        sim = jnp.where(cm, mask_value, sim)
    attn = jax.nn.softmax(sim, axis=-1)
    return jnp.einsum("bhij,bhjd->bhid", attn, v)


if __name__ == "__main__":
    key = jax.random.PRNGKey(0)
    kq, kk, kv_, km = jax.random.split(key, 4)

    # --- small smoke test (module-scale shapes; single kv block fast path) ---
    B, H, N, J, D = 2, 2, 8, 8, 32
    q = jax.random.normal(kq, (B, H, N, D), dtype=jnp.float32)
    k = jax.random.normal(kk, (B, H, J, D), dtype=jnp.float32)
    v = jax.random.normal(kv_, (B, H, J, D), dtype=jnp.float32)
    mask = jax.random.bernoulli(km, 0.8, (B, J))
    mask = mask.at[:, 0].set(True)  # guarantee at least one valid key per row

    out = jax.block_until_ready(attend(q, k, v))
    assert jnp.allclose(out, _attend_ref(q, k, v), atol=1e-5, rtol=1e-5)

    out_m = jax.block_until_ready(attend(q, k, v, mask=mask))
    assert jnp.allclose(out_m, _attend_ref(q, k, v, mask=mask), atol=1e-5, rtol=1e-5)

    out_c = jax.block_until_ready(attend(q, k, v, causal=True))
    assert jnp.allclose(out_c, _attend_ref(q, k, v, causal=True), atol=1e-5, rtol=1e-5)

    # shared-KV ('b j d') path: K/V stay (B, J, D) in HBM, indexed via bh // H.
    k3, v3 = k[:, 0], v[:, 0]
    out_s = jax.block_until_ready(attend(q, k3, v3, mask=mask))
    assert jnp.allclose(out_s, _attend_ref(q, k3, v3, mask=mask), atol=1e-5, rtol=1e-5)

    # --- tiled flash path: multiple q/kv blocks, online softmax + causal block skip ---
    B2, H2, N2, J2, D2 = 2, 2, 256, 256, 64
    kq2, kk2, kv2, km2 = jax.random.split(jax.random.PRNGKey(1), 4)
    q2 = jax.random.normal(kq2, (B2, H2, N2, D2), dtype=jnp.float32)
    k2 = jax.random.normal(kk2, (B2, H2, J2, D2), dtype=jnp.float32)
    v2 = jax.random.normal(kv2, (B2, H2, J2, D2), dtype=jnp.float32)
    mask2 = jax.random.bernoulli(km2, 0.8, (B2, J2)).at[:, 0].set(True)

    out2 = jax.block_until_ready(
        attend(q2, k2, v2, mask=mask2, causal=True, tq=128, tkv=128))
    ref2 = _attend_ref(q2, k2, v2, mask=mask2, causal=True)
    assert jnp.allclose(out2, ref2, atol=2e-5, rtol=2e-5)

    # flash path, non-causal, shared KV
    out3 = jax.block_until_ready(attend(q2, k2[:, 0], v2[:, 0], tq=128, tkv=128))
    ref3 = _attend_ref(q2, k2[:, 0], v2[:, 0])
    assert jnp.allclose(out3, ref3, atol=2e-5, rtol=2e-5)

    # TODO(synk): attn_dropout is identity in eval mode / dropout=0.0; stochastic
    # training-time dropout (pltpu.prng_*) is not implemented here.
    print("KERNEL_OK")
</pallas_src>

<mosaic_0001>
module attributes {stable_mosaic.version = 11 : i64} {
  func.func @_attend_kernel_single(%arg0: i32, %arg1: i32, %arg2: memref<1x8x32xf32, #tpu.memory_space<vmem>>, %arg3: memref<1x8x32xf32, #tpu.memory_space<vmem>>, %arg4: memref<1x8x32xf32, #tpu.memory_space<vmem>>, %arg5: memref<1x8x32xf32, #tpu.memory_space<vmem>>) attributes {dimension_semantics = [#tpu.dimension_semantics<parallel>, #tpu.dimension_semantics<parallel>], iteration_bounds = array<i64: 4, 1>, scalar_prefetch = 0 : i64, scratch_operands = 0 : i64, tpu.core_type = #tpu.core_type<tc>, window_params = [{transform_indices = @transform_0, window_bounds = array<i64: 1, 8, 32>}, {transform_indices = @transform_1, window_bounds = array<i64: 1, 8, 32>}, {transform_indices = @transform_2, window_bounds = array<i64: 1, 8, 32>}, {transform_indices = @transform_3, window_bounds = array<i64: 1, 8, 32>}]} {
    %c0 = arith.constant 0 : index
    %c0_0 = arith.constant 0 : index
    %c0_1 = arith.constant 0 : index
    %0 = vector.load %arg2[%c0, %c0_0, %c0_1] : memref<1x8x32xf32, #tpu.memory_space<vmem>>, vector<1x8x32xf32>
    %1 = vector.shape_cast %0 : vector<1x8x32xf32> to vector<8x32xf32>
    %c0_2 = arith.constant 0 : index
    %c0_3 = arith.constant 0 : index
    %c0_4 = arith.constant 0 : index
    %2 = vector.load %arg3[%c0_2, %c0_3, %c0_4] : memref<1x8x32xf32, #tpu.memory_space<vmem>>, vector<1x8x32xf32>
    %3 = vector.shape_cast %2 : vector<1x8x32xf32> to vector<8x32xf32>
    %cst = arith.constant 0.176776692 : f32
    %4 = vector.broadcast %cst : f32 to vector<8x32xf32>
    %5 = arith.mulf %1, %4 : vector<8x32xf32>
    %cst_5 = arith.constant dense<0.000000e+00> : vector<8x8xf32>
    %6 = tpu.matmul %5, %3, %cst_5 {dimension_numbers = #tpu.dot_dimension_numbers<[1], [1], [0], [0], [0, 0, 1, 0], [], []>} : vector<8x32xf32>, vector<8x32xf32>, vector<8x8xf32> -> vector<8x8xf32>
    %cst_6 = arith.constant dense<0xFF800000> : vector<8xf32>
    %7 = vector.multi_reduction <maximumf>, %6, %cst_6 [1] : vector<8x8xf32> to vector<8xf32>
    %8 = vector.shape_cast %7 : vector<8xf32> to vector<8x1xf32>
    %9 = vector.broadcast %8 : vector<8x1xf32> to vector<8x8xf32>
    %10 = arith.subf %6, %9 : vector<8x8xf32>
    %11 = math.exp %10 : vector<8x8xf32>
    %cst_7 = arith.constant dense<0.000000e+00> : vector<8xf32>
    %12 = vector.multi_reduction <add>, %11, %cst_7 [1] : vector<8x8xf32> to vector<8xf32>
    %13 = vector.shape_cast %12 : vector<8xf32> to vector<8x1xf32>
    %c0_8 = arith.constant 0 : index
    %c0_9 = arith.constant 0 : index
    %c0_10 = arith.constant 0 : index
    %14 = vector.load %arg4[%c0_8, %c0_9, %c0_10] : memref<1x8x32xf32, #tpu.memory_space<vmem>>, vector<1x8x32xf32>
    %15 = vector.shape_cast %14 : vector<1x8x32xf32> to vector<8x32xf32>
    %cst_11 = arith.constant dense<0.000000e+00> : vector<8x32xf32>
    %16 = tpu.matmul %11, %15, %cst_11 {dimension_numbers = #tpu.dot_dimension_numbers<[1], [0], [0], [1], [0, 0, 1, 1], [], []>} : vector<8x8xf32>, vector<8x32xf32>, vector<8x32xf32> -> vector<8x32xf32>
    %17 = tpu.reciprocal %13 : vector<8x1xf32> -> vector<8x1xf32>
    %18 = vector.broadcast %17 : vector<8x1xf32> to vector<8x32xf32>
    %19 = arith.mulf %16, %18 : vector<8x32xf32>
    %c0_12 = arith.constant 0 : index
    %c0_13 = arith.constant 0 : index
    %c0_14 = arith.constant 0 : index
    %20 = vector.load %arg5[%c0_12, %c0_13, %c0_14] : memref<1x8x32xf32, #tpu.memory_space<vmem>>, vector<1x8x32xf32>
    %21 = vector.shape_cast %20 : vector<1x8x32xf32> to vector<8x32xf32>
    %22 = vector.shape_cast %19 : vector<8x32xf32> to vector<1x8x32xf32>
    tpu.vector_store %arg5[%c0_12, %c0_13, %c0_14], %22 {strides = array<i32>} : memref<1x8x32xf32, #tpu.memory_space<vmem>>, vector<1x8x32xf32>,
    return
  }
  func.func @transform_0(%arg0: i32, %arg1: i32) -> (i32, i32, i32) {
    %c0_i32 = arith.constant 0 : i32
    %c0_i32_0 = arith.constant 0 : i32
    return %arg0, %arg1, %c0_i32 : i32, i32, i32
  }
  func.func @transform_1(%arg0: i32, %arg1: i32) -> (i32, i32, i32) {
    %c0_i32 = arith.constant 0 : i32
    %c0_i32_0 = arith.constant 0 : i32
    %c0_i32_1 = arith.constant 0 : i32
    return %arg0, %c0_i32, %c0_i32_0 : i32, i32, i32
  }
  func.func @transform_2(%arg0: i32, %arg1: i32) -> (i32, i32, i32) {
    %c0_i32 = arith.constant 0 : i32
    %c0_i32_0 = arith.constant 0 : i32
    %c0_i32_1 = arith.constant 0 : i32
    return %arg0, %c0_i32, %c0_i32_0 : i32, i32, i32
  }
  func.func @transform_3(%arg0: i32, %arg1: i32) -> (i32, i32, i32) {
    %c0_i32 = arith.constant 0 : i32
    %c0_i32_0 = arith.constant 0 : i32
    return %arg0, %arg1, %c0_i32 : i32, i32, i32
  }
}

</mosaic_0001>

<llo_original>
// kernel: tpu_custom_call.1
$region0: #{tpu_custom_call.1}
  #allocation0 [shape = 'u32[]', space=smem, size = 0x4, offset = 0x4, fixed_abs, tag = 'smem constant byte address 0x4 - core index']
  #allocation1 [shape = 'u32[72,128]{1,0:T(1,128)}', space=vmem, size = 0x9000, scoped, tag = 'internal scratch']
  %s0 = inlined_call_operand.hbm [shape: f32[4,8,32], index: 0, kind: input, shape index: {}]
  %s1 = inlined_call_operand.hbm [shape: f32[4,8,32], index: 1, kind: input, shape index: {}]
  %s2 = inlined_call_operand.hbm [shape: f32[4,8,32], index: 2, kind: input, shape index: {}]
  %s3 = inlined_call_operand.hbm [shape: f32[4,8,32], index: 3, kind: output, shape index: {}]
  %s4 = sld [smem:[#allocation0]]
  $region57: #{tpu_custom_call.1} parent=0
    _
  %s6 = ssub.s32 1, %s4
  %s7 = scalar_select 0, %s6, %s4
  $region1: #{tpu_custom_call.1} parent=0
    #allocation2 [shape = 'u8[8192]{0}', space=vmem, size = 0x2000, scoped, tag = 'input window, operand 0']
    #allocation3 [shape = 's32[2]{0}', space=sflag, size = 0x8, scoped, tag = 'scoped memory for tpu_custom_call.1']
    #allocation4 [shape = 's32[2]{0}', space=sflag, size = 0x8, scoped, tag = 'scoped memory for tpu_custom_call.1']
    #allocation5 [shape = 'u8[8192]{0}', space=vmem, size = 0x2000, scoped, tag = 'input window, operand 1']
    #allocation6 [shape = 's32[2]{0}', space=sflag, size = 0x8, scoped, tag = 'scoped memory for tpu_custom_call.1']
    #allocation7 [shape = 'u8[8192]{0}', space=vmem, size = 0x2000, scoped, tag = 'input window, operand 2']
    #allocation8 [shape = 'u8[8192]{0}', space=vmem, size = 0x2000, scoped, tag = 'output window, operand 0']
    %8 = vsyncpa [#allocation3], 0
    %s9 = scalar_lea.sflag [#allocation3], 1
    %10 = vsyncpa %s9, 0
    %11 = vsyncpa [#allocation6], 0
    %s12 = scalar_lea.sflag [#allocation6], 1
    %13 = vsyncpa %s12, 0
    %14 = vsyncpa [#allocation4], 0
    %s15 = scalar_lea.sflag [#allocation4], 1
    %16 = vsyncpa %s15, 0
    loop: start=0, step=1, limit=6
    $region2: #{tpu_custom_call.1} parent=1 // loop_pre_header
      _
    $region3: #{tpu_custom_call.1} parent=1 // loop_header
      %s18 = sphi 0, %s22
      %p19 = scmp.ge.s32.totalorder %s18, 6
      %s25 = sphi 0, %s37
      %s26 = sphi 0, %s33
      %s27 = sphi 0, %s25
      %s28 = sphi 0, %s26
      %s29 = sphi 0, %s27
      %s30 = sphi 0, %s28
      %s42 = sphi 0, %s44
      %s45 = sphi 0, %s42
      %s46 = sphi 0, %s45
      %s62 = sphi 0, %s46
      %s68 = sphi 0, %s70
      %s71 = sphi 0, %s68
      %s72 = sphi 0, %s71
      %s88 = sphi 0, %s72
      %s94 = sphi 0, %s96
      %s97 = sphi 0, %s94
      %s98 = sphi 0, %s97
      %s114 = sphi 0, %s98
      %s122 = sphi 0, %s124
      %s125 = sphi 0, %s122
      %s126 = sphi 0, %s125
      %s142 = sphi 0, %s126
    $region4: #{tpu_custom_call.1} parent=1 // loop_header_branch
      %21 = sbr.rel (%p19) target = $region8
    $region5: #{tpu_custom_call.1} parent=1 // loop_body
      %s23 = ssub.s32 %s18, 1
      %s24 = ssub.s32 %s18, 2
      %s31 = sadd.s32 1, %s26
      %p32 = scmp.ge.s32.totalorder %s31, 1
      %s33 = scalar_select %p32, 0, %s31
      %s34 = sadd.s32 1, %s25
      %s35 = scalar_select %p32, %s34, %s25
      %p36 = scmp.ge.s32.totalorder %s35, 4
      %s37 = scalar_select %p36, 0, %s35
      %s38 = ssub.s32 %s25, %s37
      %s39 = ssub.s32 %s26, %s33
      %s40 = sor.u32 %s38, %s39
      %p41 = scmp.eq.s32.totalorder %s40, 0
      %s43 = sadd.s32 %s42, 1
      %s44 = scalar_select %p41, %s42, %s43
      %p47 = pneg %p41
      %p48 = scmp.eq.s32.totalorder %s18, 3
      %p49 = por %p47, %p48
      %p50 = scmp.ne.s32.totalorder %s42, %s45
      %p51 = scmp.eq.s32.totalorder %s18, 0
      %p52 = por %p50, %p51
      %p53 = scmp.ne.s32.totalorder %s42, %s45
      %p54 = scmp.eq.s32.totalorder %s23, 3
      %p55 = por %p53, %p54
      %p56 = scmp.ne.s32.totalorder %s45, %s46
      %p57 = scmp.eq.s32.totalorder %s23, 0
      %p58 = por %p56, %p57
      %p59 = scmp.ne.s32.totalorder %s45, %s46
      %p60 = scmp.eq.s32.totalorder %s24, 3
      %p61 = por %p59, %p60
      %p63 = scmp.ne.s32.totalorder %s46, %s62
      %p64 = scmp.eq.s32.totalorder %s24, 0
      %p65 = por %p63, %p64
      %s66 = ssub.s32 %s25, %s37
      %p67 = scmp.eq.s32.totalorder %s66, 0
      %s69 = sadd.s32 %s68, 1
      %s70 = scalar_select %p67, %s68, %s69
      %p73 = pneg %p67
      %p74 = scmp.eq.s32.totalorder %s18, 3
      %p75 = por %p73, %p74
      %p76 = scmp.ne.s32.totalorder %s68, %s71
      %p77 = scmp.eq.s32.totalorder %s18, 0
      %p78 = por %p76, %p77
      %p79 = scmp.ne.s32.totalorder %s68, %s71
      %p80 = scmp.eq.s32.totalorder %s23, 3
      %p81 = por %p79, %p80
      %p82 = scmp.ne.s32.totalorder %s71, %s72
      %p83 = scmp.eq.s32.totalorder %s23, 0
      %p84 = por %p82, %p83
      %p85 = scmp.ne.s32.totalorder %s71, %s72
      %p86 = scmp.eq.s32.totalorder %s24, 3
      %p87 = por %p85, %p86
      %p89 = scmp.ne.s32.totalorder %s72, %s88
      %p90 = scmp.eq.s32.totalorder %s24, 0
      %p91 = por %p89, %p90
      %s92 = ssub.s32 %s25, %s37
      %p93 = scmp.eq.s32.totalorder %s92, 0
      %s95 = sadd.s32 %s94, 1
      %s96 = scalar_select %p93, %s94, %s95
      %p99 = pneg %p93
      %p100 = scmp.eq.s32.totalorder %s18, 3
      %p101 = por %p99, %p100
      %p102 = scmp.ne.s32.totalorder %s94, %s97
      %p103 = scmp.eq.s32.totalorder %s18, 0
      %p104 = por %p102, %p103
      %p105 = scmp.ne.s32.totalorder %s94, %s97
      %p106 = scmp.eq.s32.totalorder %s23, 3
      %p107 = por %p105, %p106
      %p108 = scmp.ne.s32.totalorder %s97, %s98
      %p109 = scmp.eq.s32.totalorder %s23, 0
      %p110 = por %p108, %p109
      %p111 = scmp.ne.s32.totalorder %s97, %s98
      %p112 = scmp.eq.s32.totalorder %s24, 3
      %p113 = por %p111, %p112
      %p115 = scmp.ne.s32.totalorder %s98, %s114
      %p116 = scmp.eq.s32.totalorder %s24, 0
      %p117 = por %p115, %p116
      %s118 = ssub.s32 %s25, %s37
      %s119 = ssub.s32 %s26, %s33
      %s120 = sor.u32 %s118, %s119
      %p121 = scmp.eq.s32.totalorder %s120, 0
      %s123 = sadd.s32 %s122, 1
      %s124 = scalar_select %p121, %s122, %s123
      %p127 = pneg %p121
      %p128 = scmp.eq.s32.totalorder %s18, 3
      %p129 = por %p127, %p128
      %p130 = scmp.ne.s32.totalorder %s122, %s125
      %p131 = scmp.eq.s32.totalorder %s18, 0
      %p132 = por %p130, %p131
      %p133 = scmp.ne.s32.totalorder %s122, %s125
      %p134 = scmp.eq.s32.totalorder %s23, 3
      %p135 = por %p133, %p134
      %p136 = scmp.ne.s32.totalorder %s125, %s126
      %p137 = scmp.eq.s32.totalorder %s23, 0
      %p138 = por %p136, %p137
      %p139 = scmp.ne.s32.totalorder %s125, %s126
      %p140 = scmp.eq.s32.totalorder %s24, 3
      %p141 = por %p139, %p140
      %p143 = scmp.ne.s32.totalorder %s126, %s142
      %p144 = scmp.eq.s32.totalorder %s24, 0
      %p145 = por %p143, %p144
      %p146 = scmp.le.s32.totalorder 1, %s18
      %p147 = scmp.lt.s32.totalorder %s18, 5
      %p148 = pnand %p146, %p147
      %p149 = pneg %p148
      // Predicated region
      $region9: #{tpu_custom_call.1} parent=5 // pred_check
        _
      $region10: #{tpu_custom_call.1} parent=5 // pred_check_branch
        %151 = sbr.rel (%p148) target = $region12
      $region11: #{tpu_custom_call.1} parent=5 // pred_region
        %s152 = ssub.s32 %s18, 1
      $region12: #{tpu_custom_call.1} parent=5 // pred_fallthru
        _
      %p153 = scmp.lt.s32.totalorder %s18, 4
      // Predicated region
      $region13: #{tpu_custom_call.1} parent=5 // pred_check
        %p154 = pneg %p153
      $region14: #{tpu_custom_call.1} parent=5 // pred_check_branch
        %156 = sbr.rel (%p154) target = $region16
      $region15: #{tpu_custom_call.1} parent=5 // pred_region
        // Predicated region
        $region17: #{tpu_custom_call.1} parent=15 // pred_check
          %p157 = pneg %p52
        $region18: #{tpu_custom_call.1} parent=15 // pred_check_branch
          %159 = sbr.rel (%p157) target = $region20
        $region19: #{tpu_custom_call.1} parent=15 // pred_region
          %s160 = sand.u32 %s42, 1
          %s161 = scalar_lea.sflag [#allocation3], %s160
          %s162 = sand.u32 %s42, 1
          %s163 = smul.addr %s162, 8
          %s164 = scalar_lea.vmem [#allocation2], %s163
          %166 = vsyncadd %s161, 0
          %s167 = sadd.s32 %s26, %s25
          %s168 = smul.addr %s167, 8
          %s169 = scalar_lea.hbm %s0, %s168
          %s171 = sshll.u32 %s169, 4
          %s172 = int_to_ptr.hbm [resolvable:$true] %s171
          %s173 = sshll.u32 %s164, 4
          %s174 = int_to_ptr.vmem [resolvable:$true] %s173
          %176 = dma.hbm_to_vmem [thread:$0]  %s172, 128, %s174, %s161
        $region20: #{tpu_custom_call.1} parent=15 // pred_fallthru
          _
        // Predicated region
        $region21: #{tpu_custom_call.1} parent=15 // pred_check
          %p177 = pneg %p78
        $region22: #{tpu_custom_call.1} parent=15 // pred_check_branch
          %179 = sbr.rel (%p177) target = $region24
        $region23: #{tpu_custom_call.1} parent=15 // pred_region
          %s180 = sand.u32 %s18, 1
          %s181 = scalar_lea.sflag [#allocation6], %s180
          %s182 = sand.u32 %s68, 1
          %s183 = smul.addr %s182, 8
          %s184 = scalar_lea.vmem [#allocation5], %s183
          %186 = vsyncadd %s181, 0
          %s187 = smul.addr %s25, 8
          %s188 = scalar_lea.hbm %s1, %s187
          %s190 = sshll.u32 %s188, 4
          %s191 = int_to_ptr.hbm [resolvable:$true] %s190
          %s192 = sshll.u32 %s184, 4
          %s193 = int_to_ptr.vmem [resolvable:$true] %s192
          %195 = dma.hbm_to_vmem [thread:$0]  %s191, 128, %s193, %s181
        $region24: #{tpu_custom_call.1} parent=15 // pred_fallthru
          _
        // Predicated region
        $region25: #{tpu_custom_call.1} parent=15 // pred_check
          %p196 = pneg %p104
        $region26: #{tpu_custom_call.1} parent=15 // pred_check_branch
          %198 = sbr.rel (%p196) target = $region28
        $region27: #{tpu_custom_call.1} parent=15 // pred_region
          %s199 = sand.u32 %s18, 1
          %s200 = scalar_lea.sflag [#allocation6], %s199
          %s201 = sand.u32 %s94, 1
          %s202 = smul.addr %s201, 8
          %s203 = scalar_lea.vmem [#allocation7], %s202
          %205 = vsyncadd %s200, 0
          %s206 = smul.addr %s25, 8
          %s207 = scalar_lea.hbm %s2, %s206
          %s209 = sshll.u32 %s207, 4
          %s210 = int_to_ptr.hbm [resolvable:$true] %s209
          %s211 = sshll.u32 %s203, 4
          %s212 = int_to_ptr.vmem [resolvable:$true] %s211
          %214 = dma.hbm_to_vmem [thread:$0]  %s210, 128, %s212, %s200
        $region28: #{tpu_custom_call.1} parent=15 // pred_fallthru
          _
      $region16: #{tpu_custom_call.1} parent=5 // pred_fallthru
        _
      %p215 = scmp.le.s32.totalorder 1, %s18
      %p216 = scmp.lt.s32.totalorder %s18, 5
      %p217 = pnand %p215, %p216
      %p218 = pneg %p217
      // Predicated region
      $region29: #{tpu_custom_call.1} parent=5 // pred_check
        _
      $region30: #{tpu_custom_call.1} parent=5 // pred_check_branch
        %220 = sbr.rel (%p217) target = $region32
      $region31: #{tpu_custom_call.1} parent=5 // pred_region
        %s221 = ssub.s32 %s18, 1
        %s222 = sand.u32 %s45, 1
        %s223 = scalar_lea.sflag [#allocation3], %s222
        %s224 = sand.u32 %s45, 1
        %s225 = smul.addr %s224, 8
        %s226 = scalar_lea.vmem [#allocation2], %s225
        // Predicated region
        $region33: #{tpu_custom_call.1} parent=31 // pred_check
          %p227 = pneg %p58
        $region34: #{tpu_custom_call.1} parent=31 // pred_check_branch
          %229 = sbr.rel (%p227) target = $region36
        $region35: #{tpu_custom_call.1} parent=31 // pred_region
          %231 = dma.done %s223, 128
        $region36: #{tpu_custom_call.1} parent=31 // pred_fallthru
          _
        %s232 = sand.u32 %s23, 1
        %s233 = scalar_lea.sflag [#allocation6], %s232
        %s234 = sand.u32 %s71, 1
        %s235 = smul.addr %s234, 8
        %s236 = scalar_lea.vmem [#allocation5], %s235
        // Predicated region
        $region37: #{tpu_custom_call.1} parent=31 // pred_check
          %p237 = pneg %p84
        $region38: #{tpu_custom_call.1} parent=31 // pred_check_branch
          %239 = sbr.rel (%p237) target = $region40
        $region39: #{tpu_custom_call.1} parent=31 // pred_region
          %241 = dma.done %s233, 128
        $region40: #{tpu_custom_call.1} parent=31 // pred_fallthru
          _
        %s242 = sand.u32 %s23, 1
        %s243 = scalar_lea.sflag [#allocation6], %s242
        %s244 = sand.u32 %s97, 1
        %s245 = smul.addr %s244, 8
        %s246 = scalar_lea.vmem [#allocation7], %s245
        // Predicated region
        $region41: #{tpu_custom_call.1} parent=31 // pred_check
          %p247 = pneg %p110
        $region42: #{tpu_custom_call.1} parent=31 // pred_check_branch
          %249 = sbr.rel (%p247) target = $region44
        $region43: #{tpu_custom_call.1} parent=31 // pred_region
          %251 = dma.done %s243, 128
        $region44: #{tpu_custom_call.1} parent=31 // pred_fallthru
          _
        %s252 = sand.u32 %s45, 1
        %s253 = scalar_lea.sflag [#allocation3], %s252
        %s254 = sand.u32 %s45, 1
        %s255 = smul.addr %s254, 8
        %s256 = scalar_lea.vmem [#allocation2], %s255
        %p257 = pneg %p58
        %p258 = pneg %p55
        %s259 = sand.u32 %s23, 1
        %s260 = scalar_lea.sflag [#allocation6], %s259
        %s261 = sand.u32 %s71, 1
        %s262 = smul.addr %s261, 8
        %s263 = scalar_lea.vmem [#allocation5], %s262
        %p264 = pneg %p84
        %p265 = pneg %p81
        %s266 = sand.u32 %s23, 1
        %s267 = scalar_lea.sflag [#allocation6], %s266
        %s268 = sand.u32 %s97, 1
        %s269 = smul.addr %s268, 8
        %s270 = scalar_lea.vmem [#allocation7], %s269
        %p271 = pneg %p110
        %p272 = pneg %p107
        %p273 = pneg %p138
        %p274 = pneg %p135
        %s275 = sand.u32 %s125, 1
        %s276 = scalar_lea.sflag [#allocation4], %s275
        %s277 = sand.u32 %s125, 1
        %s278 = smul.addr %s277, 8
        %s279 = scalar_lea.vmem [#allocation8], %s278
        %v280 = vld [vmem:[%s226] sm:$0xff]
        %v281 = vld [vmem:[%s236] sm:$0xff]
        %v282 = vmul.f32 %v280, 0.17677669
        %vm283 = vcmask 261120
        %v285 = vsel %vm283, %v282, 0
        %v288 = vsel %vm283, %v281, 0
        %290 = vmatpush.xpose.msra.mxu0 0.0
        %291 = vmatpush.xpose.msra.mxu0 0.0
        %292 = vmatpush.xpose.msra.mxu0 0.0
        %293 = vmatpush.xpose.msra.mxu0 0.0
        %294 = vmatpush.xpose.msra.mxu0 0.0
        %295 = vmatpush.xpose.msra.mxu0 0.0
        %296 = vmatpush.xpose.msra.mxu0 0.0
        %297 = vmatpush.xpose.msra.mxu0 0.0
        %298 = vmatpush.xpose.msra.mxu0 0.0
        %299 = vmatpush.xpose.msra.mxu0 0.0
        %300 = vmatpush.xpose.msra.mxu0 0.0
        %301 = vmatpush.xpose.msra.mxu0 0.0
        %302 = vmatpush.xpose.msra.mxu0 0.0
        %303 = vmatpush.xpose.msra.mxu0 0.0
        %304 = vmatpush.xpose.msra.mxu0 0.0
        %305 = vmatpush.xpose.msra.mxu0 %v288
        %306 = vmatmul.f32.gmra.mxu0 %v285
        %v307 = vpop.f32.mrf.mxu0
        %v308 = vadd.f32 0.0, %v307
        %309 = vdwg.mxu0
        %vm310 = vcmask 64512
        %v311 = vsel %vm310, %v308, -inf
        %312 = vmax.xlane.f32.xlu0 %v311
        %v313 = vpop.xlane.xlu0 %312
        %v314 = vsub.f32 %v308, %v313
        %v315 = vmul.f32 %v314, 1.442695
        %v316 = vpow.pop %v315
        %v317 = vsel %vm310, %v316, 0.0
        %318 = vadd.xlane.f32.xlu0 %v317
        %v319 = vpop.xlane.xlu0 %318
        %v320 = vld [vmem:[%s246] sm:$0xff]
        %v322 = vsel %vm310, %v316, 0
        %324 = vmatpush.msra.mxu0 0.0
        %325 = vmatpush.msra.mxu0 0.0
        %326 = vmatpush.msra.mxu0 0.0
        %327 = vmatpush.msra.mxu0 0.0
        %328 = vmatpush.msra.mxu0 0.0
        %329 = vmatpush.msra.mxu0 0.0
        %330 = vmatpush.msra.mxu0 0.0
        %331 = vmatpush.msra.mxu0 0.0
        %332 = vmatpush.msra.mxu0 0.0
        %333 = vmatpush.msra.mxu0 0.0
        %334 = vmatpush.msra.mxu0 0.0
        %335 = vmatpush.msra.mxu0 0.0
        %336 = vmatpush.msra.mxu0 0.0
        %337 = vmatpush.msra.mxu0 0.0
        %338 = vmatpush.msra.mxu0 0.0
        %339 = vmatpush.msra.mxu0 %v320
        %340 = vmatmul.f32.gmra.mxu0 %v322
        %v341 = vpop.f32.mrf.mxu0
        %v342 = vadd.f32 0.0, %v341
        %343 = vdwg.mxu0
        %v344 = vrcp.pop %v319
        %v345 = vmul.f32 %v319, %v344
        %v346 = vsub.f32 1.0, %v345
        %v347 = vmul.f32 %v344, %v346
        %v348 = vadd.f32 %v344, %v347
        %vm349 = vweird.f32 %v319
        %vm350 = vweird.f32 %v344
        %vm351 = vmor %vm349, %vm350
        %v352 = vsel %vm351, %v344, %v348
        %v353 = vand.u32 2147483647, %v319
        %vm354 = vcmp.eq.f32.partialorder %v353, 8.507059e+37
        %v355 = vand.u32 %v319, 2147483648
        %v356 = vor.u32 1.1754944e-38, %v355
        %v357 = vsel %vm354, %v356, %v352
        %v358 = vmul.f32 %v342, %v357
        %359 = vst.msk [vmem:[%s279] sm:$0xff] %vm283, %v358
        %s360 = sand.u32 %s125, 1
        %s361 = scalar_lea.sflag [#allocation4], %s360
        %s362 = sand.u32 %s125, 1
        %s363 = smul.addr %s362, 8
        %s364 = scalar_lea.vmem [#allocation8], %s363
        // Predicated region
        $region45: #{tpu_custom_call.1} parent=31 // pred_check
          %p365 = pneg %p135
        $region46: #{tpu_custom_call.1} parent=31 // pred_check_branch
          %367 = sbr.rel (%p365) target = $region48
        $region47: #{tpu_custom_call.1} parent=31 // pred_region
          %369 = vsyncadd %s361, 0
          %s370 = sadd.s32 %s28, %s27
          %s371 = smul.addr %s370, 8
          %s372 = scalar_lea.hbm %s3, %s371
          %s374 = sshll.u32 %s364, 4
          %s375 = int_to_ptr.vmem [resolvable:$true] %s374
          %s376 = sshll.u32 %s372, 4
          %s377 = int_to_ptr.hbm [resolvable:$true] %s376
          %379 = dma.vmem_to_hbm [thread:$0]  %s375, 128, %s377, %s361
        $region48: #{tpu_custom_call.1} parent=31 // pred_fallthru
          _
      $region32: #{tpu_custom_call.1} parent=5 // pred_fallthru
        _
      %p380 = scmp.le.s32.totalorder 2, %s18
      // Predicated region
      $region49: #{tpu_custom_call.1} parent=5 // pred_check
        %p381 = pneg %p380
      $region50: #{tpu_custom_call.1} parent=5 // pred_check_branch
        %383 = sbr.rel (%p381) target = $region52
      $region51: #{tpu_custom_call.1} parent=5 // pred_region
        %s384 = ssub.s32 %s18, 2
        // Predicated region
        $region53: #{tpu_custom_call.1} parent=51 // pred_check
          %p385 = pneg %p141
        $region54: #{tpu_custom_call.1} parent=51 // pred_check_branch
          %387 = sbr.rel (%p385) target = $region56
        $region55: #{tpu_custom_call.1} parent=51 // pred_region
          %s388 = sand.u32 %s126, 1
          %s389 = scalar_lea.sflag [#allocation4], %s388
          %s390 = sand.u32 %s126, 1
          %s391 = smul.addr %s390, 8
          %s392 = scalar_lea.vmem [#allocation8], %s391
          %394 = dma.done %s389, 128
        $region56: #{tpu_custom_call.1} parent=51 // pred_fallthru
          _
      $region52: #{tpu_custom_call.1} parent=5 // pred_fallthru
        _
    $region6: #{tpu_custom_call.1} parent=1 // loop_footer
      %s22 = sadd.s32 1, %s18
    $region7: #{tpu_custom_call.1} parent=1 // loop_footer_branch
      %17 = sbr.rel target = $region3
    $region8: #{tpu_custom_call.1} parent=1 // loop_exit
      _
    %395 = vsyncpa [#allocation3], 1
    %s396 = scalar_lea.sflag [#allocation3], 1
    %397 = vsyncpa %s396, 1
    %398 = vsyncpa [#allocation6], 1
    %s399 = scalar_lea.sflag [#allocation6], 1
    %400 = vsyncpa %s399, 1
    %401 = vsyncpa [#allocation4], 1
    %s402 = scalar_lea.sflag [#allocation4], 1
    %403 = vsyncpa %s402, 1

</llo_original>
